<compile_context>
chip_gen: v6e
topology: v6e:2x2x1
jax: 0.10.0
libtpu: 0.0.40
codegen_flags: <defaults>
</compile_context>

<pallas_src>
import functools

import jax
import jax.numpy as jnp
from jax import lax
from jax.experimental import pallas as pl
from jax.experimental.pallas import tpu as pltpu

_EPS = 1e-8  # matches torch.nn.functional.cosine_similarity default eps


def _cosine_loss_kernel(v1_ref, v2_ref, out_ref, *, total_rows, row_tile, ragged):
    """One grid step: partial sum of (1 - cos) over a (row_tile, D) slab."""
    x = v1_ref[...].astype(jnp.float32)  # (tb, D)
    y = v2_ref[...].astype(jnp.float32)  # (tb, D)

    # NOTE(v7x): if the three cross-lane reductions ever make the XLU the
    # binding slot (small D, fast HBM), they can be moved to the idle MXU as a
    # matmul against a ones(D, 128) matrix.  Left as-is: HBM-bound today.
    dot = jnp.sum(x * y, axis=-1, keepdims=True)  # (tb, 1)
    xx = jnp.sum(x * x, axis=-1, keepdims=True)   # (tb, 1)
    yy = jnp.sum(y * y, axis=-1, keepdims=True)   # (tb, 1)

    # torch: denom = max(||x||, eps) * max(||y||, eps).  Two EUP rsqrts (not
    # rsqrt(xx*yy)) so f32 overflow behavior matches torch for huge norms.
    eps2 = jnp.float32(_EPS) * jnp.float32(_EPS)
    inv_denom = lax.rsqrt(jnp.maximum(xx, eps2)) * lax.rsqrt(jnp.maximum(yy, eps2))
    per_row = 1.0 - dot * inv_denom               # (tb, 1)

    def write_partial(vals):
        partial = jnp.sum(vals)  # scalar partial sum for this grid step
        r = lax.broadcasted_iota(jnp.int32, (8, 128), 0)
        c = lax.broadcasted_iota(jnp.int32, (8, 128), 1)
        # Lane-dense (8,128) tile; only [0,0] carries the partial, rest zeros.
        out_ref[...] = jnp.where((r == 0) & (c == 0), partial, jnp.float32(0.0))

    if ragged:
        i = pl.program_id(0)
        last = pl.num_programs(0) - 1

        @pl.when(i != last)
        def _():
            write_partial(per_row)

        @pl.when(i == last)
        def _():
            # Only the last block can contain out-of-bounds (garbage) rows.
            row_ids = (lax.broadcasted_iota(jnp.int32, (row_tile, 1), 0)
                       + i * row_tile)
            write_partial(jnp.where(row_ids < total_rows, per_row, 0.0))
    else:
        write_partial(per_row)


def _vmem_limit_bytes():
    # Per-generation scoped-VMEM limit: ~3/4 of physical capacity, capped at
    # 96 MiB (v5e/v6e have 128 MiB; v7x has 64 MiB per TensorCore).
    cap = 64 * 1024 * 1024  # conservative fallback, safe on every generation
    try:
        cap = int(pltpu.get_tpu_info().vmem_capacity_bytes)
    except Exception:
        pass
    return min(3 * cap // 4, 96 * 1024 * 1024)


def cosine_direction_loss(vec1, vec2):
    """Pallas equivalent of CosineDirectionLoss.forward. Returns a scalar f32."""
    assert vec1.shape == vec2.shape
    d = vec1.shape[-1]
    v1 = vec1.reshape(-1, d)
    v2 = vec2.reshape(-1, d)
    n = v1.shape[0]

    itemsize = jnp.dtype(v1.dtype).itemsize
    sublane = {4: 8, 2: 16, 1: 32}.get(itemsize, 8)  # sublane packing multiple

    # VMEM working-set estimate per tile row:
    #   2 inputs x 2 pipeline buffers            -> 4 * d * itemsize
    #   f32 upcast copies (only for non-f32 in)  -> 2 * d * 4
    #   up to 3 (tb, d) f32 product temporaries  -> 3 * d * 4
    per_row_bytes = 4 * d * itemsize + (8 * d if itemsize != 4 else 0) + 12 * d

    vmem_limit = _vmem_limit_bytes()
    work_budget = (2 * vmem_limit) // 3   # leave headroom for compiler scratch

    tb = work_budget // per_row_bytes
    tb = max(sublane, min(32768, (tb // sublane) * sublane))
    # Keep >= ~4 grid steps for large inputs so double-buffering overlaps and
    # both v7x TensorCores get work on the "parallel" grid axis.
    tb = min(tb, max(sublane, pl.cdiv(pl.cdiv(n, 4), sublane) * sublane))

    grid_n = pl.cdiv(n, tb)
    ragged = (n % tb) != 0

    kernel = functools.partial(_cosine_loss_kernel,
                               total_rows=n, row_tile=tb, ragged=ragged)

    cost = pl.CostEstimate(
        flops=6 * n * d,
        transcendentals=2 * n,
        bytes_accessed=2 * n * d * itemsize + grid_n * 8 * 128 * 4,
    )

    partials = pl.pallas_call(
        kernel,
        out_shape=jax.ShapeDtypeStruct((grid_n * 8, 128), jnp.float32),
        grid_spec=pltpu.PrefetchScalarGridSpec(
            num_scalar_prefetch=0,
            grid=(grid_n,),
            in_specs=[
                pl.BlockSpec((tb, d), lambda i: (i, 0)),
                pl.BlockSpec((tb, d), lambda i: (i, 0)),
            ],
            out_specs=pl.BlockSpec((8, 128), lambda i: (i, 0)),
        ),
        compiler_params=pltpu.CompilerParams(
            # Each grid step owns its own (8,128) output tile -> fully parallel
            # (lets v7x shard the grid across its 2 TensorCores).
            dimension_semantics=("parallel",),
            vmem_limit_bytes=vmem_limit,
        ),
        cost_estimate=cost,
    )(v1, v2)

    # Tiny epilogue: sum grid_n partials (all other output entries are 0).
    return jnp.sum(partials) / jnp.float32(n)


if __name__ == "__main__":
    key = jax.random.PRNGKey(0)
    k1, k2, k3, k4, k5, k6 = jax.random.split(key, 6)

    def ref(a, b):
        a = a.astype(jnp.float32)
        b = b.astype(jnp.float32)
        dot = jnp.sum(a * b, axis=-1)
        na = jnp.sqrt(jnp.sum(a * a, axis=-1))
        nb = jnp.sqrt(jnp.sum(b * b, axis=-1))
        cos = dot / (jnp.maximum(na, _EPS) * jnp.maximum(nb, _EPS))
        return jnp.mean(1.0 - cos)

    # case 1: batch=2, seq=8, hidden=128 -> 16 rows, tile-aligned
    vec1 = jax.random.normal(k1, (2, 8, 128), dtype=jnp.float32)
    vec2 = jax.random.normal(k2, (2, 8, 128), dtype=jnp.float32)
    loss = jax.block_until_ready(cosine_direction_loss(vec1, vec2))
    expected = ref(vec1, vec2)
    assert jnp.allclose(loss, expected, atol=1e-5, rtol=1e-5), (loss, expected)

    # case 2: 3*5 = 15 rows, D=64 -> ragged last block (in-kernel mask path)
    vec3 = jax.random.normal(k3, (3, 5, 64), dtype=jnp.float32)
    vec4 = jax.random.normal(k4, (3, 5, 64), dtype=jnp.float32)
    loss2 = jax.block_until_ready(cosine_direction_loss(vec3, vec4))
    expected2 = ref(vec3, vec4)
    assert jnp.allclose(loss2, expected2, atol=1e-5, rtol=1e-5), (loss2, expected2)

    # case 3: multi-step grid (4*512 = 2048 rows, D=256)
    vec5 = jax.random.normal(k5, (4, 512, 256), dtype=jnp.float32)
    vec6 = jax.random.normal(k6, (4, 512, 256), dtype=jnp.float32)
    loss3 = jax.block_until_ready(cosine_direction_loss(vec5, vec6))
    expected3 = ref(vec5, vec6)
    assert jnp.allclose(loss3, expected3, atol=1e-5, rtol=1e-5), (loss3, expected3)

    print("KERNEL_OK")
</pallas_src>

<mosaic_0001>
module attributes {stable_mosaic.version = 11 : i64} {
  func.func @_cosine_loss_kernel(%arg0: i32, %arg1: memref<8x128xf32, #tpu.memory_space<vmem>>, %arg2: memref<8x128xf32, #tpu.memory_space<vmem>>, %arg3: memref<8x128xf32, #tpu.memory_space<vmem>>) attributes {dimension_semantics = [#tpu.dimension_semantics<parallel>], iteration_bounds = array<i64: 2>, scalar_prefetch = 0 : i64, scratch_operands = 0 : i64, tpu.core_type = #tpu.core_type<tc>, window_params = [{transform_indices = @transform_0, window_bounds = array<i64: 8, 128>}, {transform_indices = @transform_1, window_bounds = array<i64: 8, 128>}, {transform_indices = @transform_2, window_bounds = array<i64: 8, 128>}]} {
    %c0 = arith.constant 0 : index
    %c0_0 = arith.constant 0 : index
    %0 = vector.load %arg1[%c0, %c0_0] : memref<8x128xf32, #tpu.memory_space<vmem>>, vector<8x128xf32>
    %c0_1 = arith.constant 0 : index
    %c0_2 = arith.constant 0 : index
    %1 = vector.load %arg2[%c0_1, %c0_2] : memref<8x128xf32, #tpu.memory_space<vmem>>, vector<8x128xf32>
    %2 = arith.mulf %0, %1 : vector<8x128xf32>
    %cst = arith.constant dense<0.000000e+00> : vector<8xf32>
    %3 = vector.multi_reduction <add>, %2, %cst [1] : vector<8x128xf32> to vector<8xf32>
    %4 = vector.shape_cast %3 : vector<8xf32> to vector<8x1xf32>
    %5 = arith.mulf %0, %0 : vector<8x128xf32>
    %cst_3 = arith.constant dense<0.000000e+00> : vector<8xf32>
    %6 = vector.multi_reduction <add>, %5, %cst_3 [1] : vector<8x128xf32> to vector<8xf32>
    %7 = vector.shape_cast %6 : vector<8xf32> to vector<8x1xf32>
    %8 = arith.mulf %1, %1 : vector<8x128xf32>
    %cst_4 = arith.constant dense<0.000000e+00> : vector<8xf32>
    %9 = vector.multi_reduction <add>, %8, %cst_4 [1] : vector<8x128xf32> to vector<8xf32>
    %10 = vector.shape_cast %9 : vector<8xf32> to vector<8x1xf32>
    %cst_5 = arith.constant 9.99999993E-9 : f32
    %cst_6 = arith.constant 9.99999993E-9 : f32
    %11 = arith.mulf %cst_5, %cst_6 : f32
    %12 = vector.broadcast %11 : f32 to vector<8x1xf32>
    %13 = arith.maximumf %7, %12 : vector<8x1xf32>
    %14 = math.rsqrt %13 : vector<8x1xf32>
    %15 = vector.broadcast %11 : f32 to vector<8x1xf32>
    %16 = arith.maximumf %10, %15 : vector<8x1xf32>
    %17 = math.rsqrt %16 : vector<8x1xf32>
    %18 = arith.mulf %14, %17 : vector<8x1xf32>
    %19 = arith.mulf %4, %18 : vector<8x1xf32>
    %cst_7 = arith.constant 1.000000e+00 : f32
    %20 = vector.broadcast %cst_7 : f32 to vector<8x1xf32>
    %21 = arith.subf %20, %19 : vector<8x1xf32>
    %22 = vector.shape_cast %21 : vector<8x1xf32> to vector<1x8x1xf32>
    %cst_8 = arith.constant dense<0.000000e+00> : vector<1xf32>
    %23 = vector.multi_reduction <add>, %22, %cst_8 [1, 2] : vector<1x8x1xf32> to vector<1xf32>
    %24 = vector.shape_cast %23 : vector<1xf32> to vector<1x1x1xf32>
    %25 = vector.extract %24[0, 0, 0] : f32 from vector<1x1x1xf32>
    %26 = tpu.iota {dimensions = array<i32: 0>} : vector<8x128xi32>
    %27 = tpu.iota {dimensions = array<i32: 1>} : vector<8x128xi32>
    %c0_i32 = arith.constant 0 : i32
    %28 = vector.broadcast %c0_i32 : i32 to vector<8x128xi32>
    %29 = arith.cmpi eq, %26, %28 : vector<8x128xi32>
    %c0_i32_9 = arith.constant 0 : i32
    %30 = vector.broadcast %c0_i32_9 : i32 to vector<8x128xi32>
    %31 = arith.cmpi eq, %27, %30 : vector<8x128xi32>
    %32 = arith.andi %29, %31 : vector<8x128xi1>
    %cst_10 = arith.constant 0.000000e+00 : f32
    %33 = vector.broadcast %25 : f32 to vector<8x128xf32>
    %34 = vector.broadcast %cst_10 : f32 to vector<8x128xf32>
    %35 = arith.select %32, %33, %34 : vector<8x128xi1>, vector<8x128xf32>
    %c0_11 = arith.constant 0 : index
    %c0_12 = arith.constant 0 : index
    %36 = vector.load %arg3[%c0_11, %c0_12] : memref<8x128xf32, #tpu.memory_space<vmem>>, vector<8x128xf32>
    tpu.vector_store %arg3[%c0_11, %c0_12], %35 {strides = array<i32>} : memref<8x128xf32, #tpu.memory_space<vmem>>, vector<8x128xf32>,
    return
  }
  func.func @transform_0(%arg0: i32) -> (i32, i32) {
    %c0_i32 = arith.constant 0 : i32
    %c0_i32_0 = arith.constant 0 : i32
    return %arg0, %c0_i32 : i32, i32
  }
  func.func @transform_1(%arg0: i32) -> (i32, i32) {
    %c0_i32 = arith.constant 0 : i32
    %c0_i32_0 = arith.constant 0 : i32
    return %arg0, %c0_i32 : i32, i32
  }
  func.func @transform_2(%arg0: i32) -> (i32, i32) {
    %c0_i32 = arith.constant 0 : i32
    %c0_i32_0 = arith.constant 0 : i32
    return %arg0, %c0_i32 : i32, i32
  }
}

</mosaic_0001>

<llo_original>
// kernel: tpu_custom_call.1
$region0: #{tpu_custom_call.1}
  #allocation0 [shape = 'u32[]', space=smem, size = 0x4, offset = 0x4, fixed_abs, tag = 'smem constant byte address 0x4 - core index']
  #allocation1 [shape = 'u32[144,128]{1,0:T(1,128)}', space=vmem, size = 0x12000, scoped, tag = 'internal scratch']
  %s0 = inlined_call_operand.hbm [shape: f32[16,128], index: 0, kind: input, shape index: {}]
  %s1 = inlined_call_operand.hbm [shape: f32[16,128], index: 1, kind: input, shape index: {}]
  %s2 = inlined_call_operand.hbm [shape: f32[16,128], index: 2, kind: output, shape index: {}]
  %s3 = sld [smem:[#allocation0]]
  $region49: #{tpu_custom_call.1} parent=0
    _
  %s5 = ssub.s32 1, %s3
  %s6 = scalar_select 0, %s5, %s3
  $region1: #{tpu_custom_call.1} parent=0
    #allocation2 [shape = 'u8[8192]{0}', space=vmem, size = 0x2000, scoped, tag = 'input window, operand 0']
    #allocation3 [shape = 's32[2]{0}', space=sflag, size = 0x8, scoped, tag = 'scoped memory for tpu_custom_call.1']
    #allocation4 [shape = 's32[2]{0}', space=sflag, size = 0x8, scoped, tag = 'scoped memory for tpu_custom_call.1']
    #allocation5 [shape = 'u8[8192]{0}', space=vmem, size = 0x2000, scoped, tag = 'input window, operand 1']
    #allocation6 [shape = 's32[2]{0}', space=sflag, size = 0x8, scoped, tag = 'scoped memory for tpu_custom_call.1']
    #allocation7 [shape = 'u8[8192]{0}', space=vmem, size = 0x2000, scoped, tag = 'output window, operand 0']
    %7 = vsyncpa [#allocation3], 0
    %s8 = scalar_lea.sflag [#allocation3], 1
    %9 = vsyncpa %s8, 0
    %10 = vsyncpa [#allocation6], 0
    %s11 = scalar_lea.sflag [#allocation6], 1
    %12 = vsyncpa %s11, 0
    %13 = vsyncpa [#allocation4], 0
    %s14 = scalar_lea.sflag [#allocation4], 1
    %15 = vsyncpa %s14, 0
    loop: start=0, step=1, limit=4
    $region2: #{tpu_custom_call.1} parent=1 // loop_pre_header
      _
    $region3: #{tpu_custom_call.1} parent=1 // loop_header
      %s17 = sphi 0, %s21
      %p18 = scmp.ge.s32.totalorder %s17, 4
      %s27 = sphi 0, %s29
      %s30 = sphi 0, %s27
      %s31 = sphi 0, %s30
      %s47 = sphi 0, %s31
      %s53 = sphi 0, %s55
      %s56 = sphi 0, %s53
      %s57 = sphi 0, %s56
      %s73 = sphi 0, %s57
      %s79 = sphi 0, %s81
      %s82 = sphi 0, %s79
      %s83 = sphi 0, %s82
      %s99 = sphi 0, %s83
    $region4: #{tpu_custom_call.1} parent=1 // loop_header_branch
      %20 = sbr.rel (%p18) target = $region8
    $region5: #{tpu_custom_call.1} parent=1 // loop_body
      %s22 = ssub.s32 %s17, 1
      %s23 = ssub.s32 %s17, 2
      %s24 = sadd.s32 %s17, 1
      %s25 = ssub.s32 %s17, %s24
      %p26 = scmp.eq.s32.totalorder %s25, 0
      %s28 = sadd.s32 %s27, 1
      %s29 = scalar_select %p26, %s27, %s28
      %p32 = pneg %p26
      %p33 = scmp.eq.s32.totalorder %s17, 1
      %p34 = por %p32, %p33
      %p35 = scmp.ne.s32.totalorder %s27, %s30
      %p36 = scmp.eq.s32.totalorder %s17, 0
      %p37 = por %p35, %p36
      %p38 = scmp.ne.s32.totalorder %s27, %s30
      %p39 = scmp.eq.s32.totalorder %s22, 1
      %p40 = por %p38, %p39
      %p41 = scmp.ne.s32.totalorder %s30, %s31
      %p42 = scmp.eq.s32.totalorder %s22, 0
      %p43 = por %p41, %p42
      %p44 = scmp.ne.s32.totalorder %s30, %s31
      %p45 = scmp.eq.s32.totalorder %s23, 1
      %p46 = por %p44, %p45
      %p48 = scmp.ne.s32.totalorder %s31, %s47
      %p49 = scmp.eq.s32.totalorder %s23, 0
      %p50 = por %p48, %p49
      %s51 = ssub.s32 %s17, %s24
      %p52 = scmp.eq.s32.totalorder %s51, 0
      %s54 = sadd.s32 %s53, 1
      %s55 = scalar_select %p52, %s53, %s54
      %p58 = pneg %p52
      %p59 = scmp.eq.s32.totalorder %s17, 1
      %p60 = por %p58, %p59
      %p61 = scmp.ne.s32.totalorder %s53, %s56
      %p62 = scmp.eq.s32.totalorder %s17, 0
      %p63 = por %p61, %p62
      %p64 = scmp.ne.s32.totalorder %s53, %s56
      %p65 = scmp.eq.s32.totalorder %s22, 1
      %p66 = por %p64, %p65
      %p67 = scmp.ne.s32.totalorder %s56, %s57
      %p68 = scmp.eq.s32.totalorder %s22, 0
      %p69 = por %p67, %p68
      %p70 = scmp.ne.s32.totalorder %s56, %s57
      %p71 = scmp.eq.s32.totalorder %s23, 1
      %p72 = por %p70, %p71
      %p74 = scmp.ne.s32.totalorder %s57, %s73
      %p75 = scmp.eq.s32.totalorder %s23, 0
      %p76 = por %p74, %p75
      %s77 = ssub.s32 %s17, %s24
      %p78 = scmp.eq.s32.totalorder %s77, 0
      %s80 = sadd.s32 %s79, 1
      %s81 = scalar_select %p78, %s79, %s80
      %p84 = pneg %p78
      %p85 = scmp.eq.s32.totalorder %s17, 1
      %p86 = por %p84, %p85
      %p87 = scmp.ne.s32.totalorder %s79, %s82
      %p88 = scmp.eq.s32.totalorder %s17, 0
      %p89 = por %p87, %p88
      %p90 = scmp.ne.s32.totalorder %s79, %s82
      %p91 = scmp.eq.s32.totalorder %s22, 1
      %p92 = por %p90, %p91
      %p93 = scmp.ne.s32.totalorder %s82, %s83
      %p94 = scmp.eq.s32.totalorder %s22, 0
      %p95 = por %p93, %p94
      %p96 = scmp.ne.s32.totalorder %s82, %s83
      %p97 = scmp.eq.s32.totalorder %s23, 1
      %p98 = por %p96, %p97
      %p100 = scmp.ne.s32.totalorder %s83, %s99
      %p101 = scmp.eq.s32.totalorder %s23, 0
      %p102 = por %p100, %p101
      %p103 = scmp.le.s32.totalorder 1, %s17
      %p104 = scmp.lt.s32.totalorder %s17, 3
      %p105 = pnand %p103, %p104
      %p106 = pneg %p105
      // Predicated region
      $region9: #{tpu_custom_call.1} parent=5 // pred_check
        _
      $region10: #{tpu_custom_call.1} parent=5 // pred_check_branch
        %108 = sbr.rel (%p105) target = $region12
      $region11: #{tpu_custom_call.1} parent=5 // pred_region
        %s109 = ssub.s32 %s17, 1
      $region12: #{tpu_custom_call.1} parent=5 // pred_fallthru
        _
      %p110 = scmp.lt.s32.totalorder %s17, 2
      // Predicated region
      $region13: #{tpu_custom_call.1} parent=5 // pred_check
        %p111 = pneg %p110
      $region14: #{tpu_custom_call.1} parent=5 // pred_check_branch
        %113 = sbr.rel (%p111) target = $region16
      $region15: #{tpu_custom_call.1} parent=5 // pred_region
        // Predicated region
        $region17: #{tpu_custom_call.1} parent=15 // pred_check
          %p114 = pneg %p37
        $region18: #{tpu_custom_call.1} parent=15 // pred_check_branch
          %116 = sbr.rel (%p114) target = $region20
        $region19: #{tpu_custom_call.1} parent=15 // pred_region
          %s117 = sand.u32 %s27, 1
          %s118 = scalar_lea.sflag [#allocation3], %s117
          %s119 = sand.u32 %s27, 1
          %s120 = smul.addr %s119, 8
          %s121 = scalar_lea.vmem [#allocation2], %s120
          %s123 = ssub.s32 128, 128
          %124 = vsyncadd %s118, %s123
          %s125 = smul.addr %s17, 128
          %s126 = scalar_lea.hbm %s0, %s125
          %s128 = sshll.u32 %s121, 4
          %s129 = int_to_ptr.vmem [resolvable:$true] %s128
          %131 = dma.hbm_to_vmem [thread:$0]  %s126, 128, %s129, %s118
        $region20: #{tpu_custom_call.1} parent=15 // pred_fallthru
          _
        // Predicated region
        $region21: #{tpu_custom_call.1} parent=15 // pred_check
          %p132 = pneg %p63
        $region22: #{tpu_custom_call.1} parent=15 // pred_check_branch
          %134 = sbr.rel (%p132) target = $region24
        $region23: #{tpu_custom_call.1} parent=15 // pred_region
          %s135 = sand.u32 %s53, 1
          %s136 = scalar_lea.sflag [#allocation6], %s135
          %s137 = sand.u32 %s53, 1
          %s138 = smul.addr %s137, 8
          %s139 = scalar_lea.vmem [#allocation5], %s138
          %s141 = ssub.s32 128, 128
          %142 = vsyncadd %s136, %s141
          %s143 = smul.addr %s17, 128
          %s144 = scalar_lea.hbm %s1, %s143
          %s146 = sshll.u32 %s139, 4
          %s147 = int_to_ptr.vmem [resolvable:$true] %s146
          %149 = dma.hbm_to_vmem [thread:$0]  %s144, 128, %s147, %s136
        $region24: #{tpu_custom_call.1} parent=15 // pred_fallthru
          _
      $region16: #{tpu_custom_call.1} parent=5 // pred_fallthru
        _
      %p150 = scmp.le.s32.totalorder 1, %s17
      %p151 = scmp.lt.s32.totalorder %s17, 3
      %p152 = pnand %p150, %p151
      %p153 = pneg %p152
      // Predicated region
      $region25: #{tpu_custom_call.1} parent=5 // pred_check
        _
      $region26: #{tpu_custom_call.1} parent=5 // pred_check_branch
        %155 = sbr.rel (%p152) target = $region28
      $region27: #{tpu_custom_call.1} parent=5 // pred_region
        %s156 = ssub.s32 %s17, 1
        %s157 = sand.u32 %s30, 1
        %s158 = scalar_lea.sflag [#allocation3], %s157
        %s159 = sand.u32 %s30, 1
        %s160 = smul.addr %s159, 8
        %s161 = scalar_lea.vmem [#allocation2], %s160
        // Predicated region
        $region29: #{tpu_custom_call.1} parent=27 // pred_check
          %p162 = pneg %p43
        $region30: #{tpu_custom_call.1} parent=27 // pred_check_branch
          %164 = sbr.rel (%p162) target = $region32
        $region31: #{tpu_custom_call.1} parent=27 // pred_region
          %165 = dma.done %s158, 128
        $region32: #{tpu_custom_call.1} parent=27 // pred_fallthru
          _
        %s166 = sand.u32 %s56, 1
        %s167 = scalar_lea.sflag [#allocation6], %s166
        %s168 = sand.u32 %s56, 1
        %s169 = smul.addr %s168, 8
        %s170 = scalar_lea.vmem [#allocation5], %s169
        // Predicated region
        $region33: #{tpu_custom_call.1} parent=27 // pred_check
          %p171 = pneg %p69
        $region34: #{tpu_custom_call.1} parent=27 // pred_check_branch
          %173 = sbr.rel (%p171) target = $region36
        $region35: #{tpu_custom_call.1} parent=27 // pred_region
          %174 = dma.done %s167, 128
        $region36: #{tpu_custom_call.1} parent=27 // pred_fallthru
          _
        %s175 = sand.u32 %s30, 1
        %s176 = scalar_lea.sflag [#allocation3], %s175
        %s177 = sand.u32 %s30, 1
        %s178 = smul.addr %s177, 8
        %s179 = scalar_lea.vmem [#allocation2], %s178
        %p180 = pneg %p43
        %p181 = pneg %p40
        %s182 = sand.u32 %s56, 1
        %s183 = scalar_lea.sflag [#allocation6], %s182
        %s184 = sand.u32 %s56, 1
        %s185 = smul.addr %s184, 8
        %s186 = scalar_lea.vmem [#allocation5], %s185
        %p187 = pneg %p69
        %p188 = pneg %p66
        %p189 = pneg %p95
        %p190 = pneg %p92
        %s191 = sand.u32 %s82, 1
        %s192 = scalar_lea.sflag [#allocation4], %s191
        %s193 = sand.u32 %s82, 1
        %s194 = smul.addr %s193, 8
        %s195 = scalar_lea.vmem [#allocation7], %s194
        %v196 = vld [vmem:[%s161] sm:$0xff]
        %v197 = vld [vmem:[%s170] sm:$0xff]
        %v198 = vmul.f32 %v196, %v197
        %199 = vadd.xlane.f32.xlu0 %v198
        %v200 = vpop.xlane.xlu0 %199
        %v201 = vmul.f32 %v196, %v196
        %202 = vadd.xlane.f32.xlu0 %v201
        %v203 = vpop.xlane.xlu0 %202
        %v204 = vmul.f32 %v197, %v197
        %205 = vadd.xlane.f32.xlu0 %v204
        %v206 = vpop.xlane.xlu0 %205
        %v207 = vmax.f32 %v203, 1e-16
        %v208 = vrsqrt.pop %v207
        %v209 = vmax.f32 %v206, 1e-16
        %v210 = vrsqrt.pop %v209
        %v211 = vmul.f32 %v208, %v210
        %v212 = vmul.f32 %v200, %v211
        %v213 = vsub.f32 1.0, %v212
        %vm214 = vcmask 7168
        %v215 = vsel %vm214, %v213, 0.0
        %216 = vadd.xlane.f32.xlu0 %v215
        %v217 = vpop.xlane.xlu0 %216
        %v218 = vrot.slane %v217, 4
        %v219 = vadd.f32 %v217, %v218
        %v220 = vrot.slane %v219, 2
        %v221 = vadd.f32 %v219, %v220
        %v222 = vrot.slane %v221, 1
        %v223 = vadd.f32 %v221, %v222
        %s224 = vtos %v223
        %v225 = vlaneseq
        %v226 = vshrl.u32 %v225, 7
        %v227 = vlaneseq
        %v228 = vand.u32 %v227, 127
        %vm229 = vcmp.eq.s32.totalorder %v226, 0
        %vm230 = vcmp.eq.s32.totalorder %v228, 0
        %vm231 = vmand %vm229, %vm230
        %v232 = vstv %s224
        %v233 = vsel %vm231, %v232, 0.0
        %234 = vst [vmem:[%s195] sm:$0xff] %v233
        %s235 = sand.u32 %s82, 1
        %s236 = scalar_lea.sflag [#allocation4], %s235
        %s237 = sand.u32 %s82, 1
        %s238 = smul.addr %s237, 8
        %s239 = scalar_lea.vmem [#allocation7], %s238
        // Predicated region
        $region37: #{tpu_custom_call.1} parent=27 // pred_check
          %p240 = pneg %p92
        $region38: #{tpu_custom_call.1} parent=27 // pred_check_branch
          %242 = sbr.rel (%p240) target = $region40
        $region39: #{tpu_custom_call.1} parent=27 // pred_region
          %s244 = ssub.s32 128, 128
          %245 = vsyncadd %s236, %s244
          %s246 = smul.addr %s22, 128
          %s247 = scalar_lea.hbm %s2, %s246
          %s249 = sshll.u32 %s239, 4
          %s250 = int_to_ptr.vmem [resolvable:$true] %s249
          %252 = dma.vmem_to_hbm [thread:$0]  %s250, 128, %s247, %s236
        $region40: #{tpu_custom_call.1} parent=27 // pred_fallthru
          _
      $region28: #{tpu_custom_call.1} parent=5 // pred_fallthru
        _
      %p253 = scmp.le.s32.totalorder 2, %s17
      // Predicated region
      $region41: #{tpu_custom_call.1} parent=5 // pred_check
        %p254 = pneg %p253
      $region42: #{tpu_custom_call.1} parent=5 // pred_check_branch
        %256 = sbr.rel (%p254) target = $region44
      $region43: #{tpu_custom_call.1} parent=5 // pred_region
        %s257 = ssub.s32 %s17, 2
        // Predicated region
        $region45: #{tpu_custom_call.1} parent=43 // pred_check
          %p258 = pneg %p98
        $region46: #{tpu_custom_call.1} parent=43 // pred_check_branch
          %260 = sbr.rel (%p258) target = $region48
        $region47: #{tpu_custom_call.1} parent=43 // pred_region
          %s261 = sand.u32 %s83, 1
          %s262 = scalar_lea.sflag [#allocation4], %s261
          %s263 = sand.u32 %s83, 1
          %s264 = smul.addr %s263, 8
          %s265 = scalar_lea.vmem [#allocation7], %s264
          %266 = dma.done %s262, 128
        $region48: #{tpu_custom_call.1} parent=43 // pred_fallthru
          _
      $region44: #{tpu_custom_call.1} parent=5 // pred_fallthru
        _
    $region6: #{tpu_custom_call.1} parent=1 // loop_footer
      %s21 = sadd.s32 1, %s17
    $region7: #{tpu_custom_call.1} parent=1 // loop_footer_branch
      %16 = sbr.rel target = $region3
    $region8: #{tpu_custom_call.1} parent=1 // loop_exit
      _
    %267 = vsyncpa [#allocation3], 1
    %s268 = scalar_lea.sflag [#allocation3], 1
    %269 = vsyncpa %s268, 1
    %270 = vsyncpa [#allocation6], 1
    %s271 = scalar_lea.sflag [#allocation6], 1
    %272 = vsyncpa %s271, 1
    %273 = vsyncpa [#allocation4], 1
    %s274 = scalar_lea.sflag [#allocation4], 1
    %275 = vsyncpa %s274, 1

</llo_original>
